<compile_context>
chip_gen: v6e
topology: v6e:2x2x1
jax: 0.10.0
libtpu: 0.0.40
codegen_flags: <defaults>
</compile_context>

<pallas_src>
import functools
import math

import jax
import jax.numpy as jnp
from jax.experimental import pallas as pl
from jax.experimental.pallas import tpu as pltpu


# --------------------------------------------------------------------------- helpers
def _cdiv(a, b):
    return (a + b - 1) // b


def _round_up(a, b):
    return _cdiv(a, b) * b


_SB_OK = None


def _single_buffer_ok():
    """Probe once whether pipeline_mode=pl.Buffered(1) (single-buffered
    grid-invariant inputs) is supported by the installed JAX/Mosaic."""
    global _SB_OK
    if _SB_OK is None:
        try:
            def _probe(x_ref, o_ref):
                o_ref[...] = x_ref[0:8, :] + 1.0

            call = pl.pallas_call(
                _probe,
                out_shape=jax.ShapeDtypeStruct((16, 128), jnp.float32),
                grid=(2,),
                in_specs=[pl.BlockSpec((16, 128), lambda i: (0, 0),
                                       pipeline_mode=pl.Buffered(1))],
                out_specs=pl.BlockSpec((8, 128), lambda i: (i, 0)),
            )
            jax.block_until_ready(call(jnp.zeros((16, 128), jnp.float32)))
            _SB_OK = True
        except Exception:
            _SB_OK = False
    return _SB_OK


def _resident_spec(shape, single_buffer):
    """BlockSpec for a grid-invariant (VMEM-resident) operand."""
    nd = len(shape)
    imap = lambda i, _n=nd: (0,) * _n
    if single_buffer:
        try:
            return pl.BlockSpec(shape, imap, pipeline_mode=pl.Buffered(1))
        except Exception:
            pass
    return pl.BlockSpec(shape, imap)


_VMEM_CAP = None


def _vmem_cap_bytes():
    """Generation-aware VMEM cap (v5e/v6e: 128 MiB, v7x: 64 MiB per TC)."""
    global _VMEM_CAP
    if _VMEM_CAP is None:
        try:
            cap = int(pltpu.get_tpu_info().vmem_capacity_bytes)
            _VMEM_CAP = int(min(0.85 * cap, 110 * 2**20))
        except Exception:
            _VMEM_CAP = 48 * 2**20
    return _VMEM_CAP


def _pick_tm(M, bytes_per_row, target=512, per_block_budget=24 * 2**20):
    """Row-block size: multiple of 8, 256-512 rows when possible, and >=2 grid
    steps when there is enough work (so 'parallel' can shard across TensorCores)."""
    Mp = _round_up(max(M, 1), 8)
    cap = max(8, (per_block_budget // max(bytes_per_row, 1)) // 8 * 8)
    tm = max(8, min(target, Mp, cap))
    if Mp > 8 and _round_up(Mp, tm) // tm < 2:
        tm = max(8, _round_up(_cdiv(Mp, 2), 8))
    return tm


def _vmem_budget(tm, K, N, mm_bytes, has_res, single_buf):
    wbuf = 1 if single_buf else 2
    need = (wbuf * (K * N * mm_bytes + 2 * N * 4)    # weights + scale/bias
            + 2 * tm * K * mm_bytes                  # double-buffered patch rows
            + 2 * tm * N * 4                         # double-buffered output rows
            + (2 * tm * N * 4 if has_res else 0)     # residual rows
            + 4 * tm * N * 4)                        # f32 intermediates headroom
    return int(min(max(16 * 2**20, 2 * need), _vmem_cap_bytes()))


# --------------------------------------------------------------------------- kernels
def _make_conv_kernel(relu, has_res):
    def kernel(x_ref, w_ref, s_ref, b_ref, *rest):
        if has_res:
            r_ref, o_ref = rest
        else:
            (o_ref,) = rest
        acc = jnp.dot(x_ref[...], w_ref[...], preferred_element_type=jnp.float32)
        acc = acc * s_ref[...] + b_ref[...]              # folded BatchNorm (eval)
        if has_res:
            acc = acc + r_ref[...].astype(jnp.float32)   # residual add
        if relu:
            acc = jnp.maximum(acc, 0.0)
        o_ref[...] = acc.astype(o_ref.dtype)
    return kernel


@functools.lru_cache(maxsize=None)
def _get_conv_call(Mp, K, N, tm, has_res, relu, mm_name, single_buf):
    mm_bytes = jnp.dtype(mm_name).itemsize
    in_specs = [pl.BlockSpec((tm, K), lambda i: (i, 0)),
                _resident_spec((K, N), single_buf),
                _resident_spec((1, N), single_buf),
                _resident_spec((1, N), single_buf)]
    if has_res:
        in_specs.append(pl.BlockSpec((tm, N), lambda i: (i, 0)))
    call = pl.pallas_call(
        _make_conv_kernel(relu=relu, has_res=has_res),
        out_shape=jax.ShapeDtypeStruct((Mp, N), jnp.float32),
        grid=(Mp // tm,),
        in_specs=in_specs,
        out_specs=pl.BlockSpec((tm, N), lambda i: (i, 0)),
        compiler_params=pltpu.CompilerParams(
            dimension_semantics=("parallel",),
            vmem_limit_bytes=_vmem_budget(tm, K, N, mm_bytes, has_res, single_buf)),
    )
    return jax.jit(call)


def _maxpool_kernel(x_ref, o_ref):
    o_ref[...] = jnp.max(x_ref[...], axis=0)


@functools.lru_cache(maxsize=None)
def _get_maxpool_call(Mp, tm, C):
    call = pl.pallas_call(
        _maxpool_kernel,
        out_shape=jax.ShapeDtypeStruct((Mp, C), jnp.float32),
        grid=(Mp // tm,),
        in_specs=[pl.BlockSpec((9, tm, C), lambda i: (0, i, 0))],
        out_specs=pl.BlockSpec((tm, C), lambda i: (i, 0)),
        compiler_params=pltpu.CompilerParams(dimension_semantics=("parallel",)),
    )
    return jax.jit(call)


def _avgpool_kernel(x_ref, o_ref):
    o_ref[...] = jnp.mean(x_ref[...].astype(jnp.float32), axis=1).astype(o_ref.dtype)


@functools.lru_cache(maxsize=None)
def _get_avgpool_call(B, HW, C):
    call = pl.pallas_call(
        _avgpool_kernel,
        out_shape=jax.ShapeDtypeStruct((B, C), jnp.float32),
        grid=(1,),
        in_specs=[pl.BlockSpec((B, HW, C), lambda i: (0, 0, 0))],
        out_specs=pl.BlockSpec((B, C), lambda i: (0, 0)),
    )
    return jax.jit(call)


# --------------------------------------------------------------------------- wrappers
def _fold_bn(bn, eps=1e-5):
    scale = bn['gamma'] / jnp.sqrt(bn['var'] + eps)
    bias = bn['beta'] - bn['mean'] * scale
    return (scale.reshape(1, -1).astype(jnp.float32),
            bias.reshape(1, -1).astype(jnp.float32))


def _im2col(x, kh, kw, stride):
    """x: spatially padded NHWC. Returns (B*OH*OW, kh*kw*C) patches, feature order
    (dh, dw, c) -- matching w.reshape(kh*kw*Cin, Cout) for HWIO weights."""
    B, H, W, C = x.shape
    OH = (H - kh) // stride + 1
    OW = (W - kw) // stride + 1
    cols = []
    for dh in range(kh):
        for dw in range(kw):
            cols.append(x[:, dh:dh + (OH - 1) * stride + 1:stride,
                          dw:dw + (OW - 1) * stride + 1:stride, :])
    p = jnp.stack(cols, axis=3)                         # (B, OH, OW, kh*kw, C)
    return p.reshape(B * OH * OW, kh * kw * C), OH, OW


def pallas_conv_bn(x, w, bn, *, stride, padding, relu, residual=None,
                   mm_dtype=jnp.bfloat16):
    """conv2d (no bias) + folded BatchNorm + optional residual + optional ReLU as one
    fused tall-M Pallas matmul."""
    B, H, W, Cin = x.shape
    KH, KW, _, Cout = w.shape
    if padding:
        x = jnp.pad(x, ((0, 0), (padding, padding), (padding, padding), (0, 0)))
    patches, OH, OW = _im2col(x, KH, KW, stride)
    M, K = patches.shape
    N = Cout
    w2 = w.reshape(K, N)

    # lane-align the contraction dim for the MXU
    Kp = _round_up(K, 128)
    if Kp != K:
        patches = jnp.pad(patches, ((0, 0), (0, Kp - K)))
        w2 = jnp.pad(w2, ((0, Kp - K), (0, 0)))

    mm = jnp.dtype(mm_dtype)
    sb = _single_buffer_ok()
    tm = _pick_tm(M, bytes_per_row=2 * Kp * mm.itemsize + 6 * N * 4)
    Mp = _round_up(M, tm)
    if Mp != M:
        patches = jnp.pad(patches, ((0, Mp - M), (0, 0)))

    scale, bias = _fold_bn(bn)
    args = [patches.astype(mm), w2.astype(mm), scale, bias]
    has_res = residual is not None
    if has_res:
        r = residual.reshape(M, N).astype(jnp.float32)
        if Mp != M:
            r = jnp.pad(r, ((0, Mp - M), (0, 0)))
        args.append(r)

    out = _get_conv_call(Mp, Kp, N, tm, has_res, relu, mm.name, sb)(*args)
    return out[:M].reshape(B, OH, OW, N)


def pallas_maxpool_3x3_s2(x):
    B, H, W, C = x.shape
    neg = float(jnp.finfo(jnp.float32).min)
    xp = jnp.pad(x.astype(jnp.float32), ((0, 0), (1, 1), (1, 1), (0, 0)),
                 constant_values=neg)
    OH = (H + 2 - 3) // 2 + 1
    OW = (W + 2 - 3) // 2 + 1
    views = []
    for dh in range(3):
        for dw in range(3):
            views.append(xp[:, dh:dh + (OH - 1) * 2 + 1:2,
                            dw:dw + (OW - 1) * 2 + 1:2, :])
    stacked = jnp.stack(views, axis=0).reshape(9, B * OH * OW, C)
    M = B * OH * OW
    tm = _pick_tm(M, bytes_per_row=(9 + 1) * C * 4 * 2)
    Mp = _round_up(M, tm)
    if Mp != M:
        stacked = jnp.pad(stacked, ((0, 0), (0, Mp - M), (0, 0)),
                          constant_values=neg)
    out = _get_maxpool_call(Mp, tm, C)(stacked)
    return out[:M].reshape(B, OH, OW, C)


def pallas_global_avgpool(x):
    B, H, W, C = x.shape
    return _get_avgpool_call(B, H * W, C)(x.reshape(B, H * W, C).astype(jnp.float32))


# ------------------------------------------------------------------ pure-JAX reference
def ref_conv_bn(x, w, bn, *, stride, padding, relu, residual=None):
    y = jax.lax.conv_general_dilated(
        x, w, (stride, stride), ((padding, padding), (padding, padding)),
        dimension_numbers=('NHWC', 'HWIO', 'NHWC'),
        precision=jax.lax.Precision.HIGHEST)
    scale, bias = _fold_bn(bn)
    y = y * scale.reshape(1, 1, 1, -1) + bias.reshape(1, 1, 1, -1)
    if residual is not None:
        y = y + residual
    if relu:
        y = jnp.maximum(y, 0.0)
    return y


def ref_maxpool_3x3_s2(x):
    return jax.lax.reduce_window(
        x, -jnp.inf, jax.lax.max, (1, 3, 3, 1), (1, 2, 2, 1),
        ((0, 0), (1, 1), (1, 1), (0, 0)))


def ref_global_avgpool(x):
    return jnp.mean(x, axis=(1, 2))


# --------------------------------------------------------------------------- model
_LAYERS = (('layer1', 1), ('layer2', 2), ('layer3', 2), ('layer4', 2))


def _resnet18_features(x_nchw, params, conv_bn, maxpool, avgpool):
    """ResNet-18 feature extractor (fc removed) on one NCHW LiDAR tensor."""
    x = jnp.transpose(x_nchw, (0, 2, 3, 1)).astype(jnp.float32)          # NHWC
    x = conv_bn(x, params['conv1'], params['bn1'], stride=2, padding=3, relu=True)
    x = maxpool(x)
    for name, first_stride in _LAYERS:
        for bi, blk in enumerate(params[name]):
            s = first_stride if bi == 0 else 1
            out = conv_bn(x, blk['conv1'], blk['bn1'], stride=s, padding=1, relu=True)
            identity = x
            if 'down_conv' in blk:
                identity = conv_bn(x, blk['down_conv'], blk['down_bn'],
                                   stride=s, padding=0, relu=False)
            x = conv_bn(out, blk['conv2'], blk['bn2'], stride=1, padding=1,
                        relu=True, residual=identity)
    return avgpool(x)                                                     # (B, 512)


def lidar_encoder_forward(inputs, params, matmul_dtype=jnp.bfloat16):
    """Pallas forward of LidarEncoder: sum of ResNet-18 features over the list."""
    conv = functools.partial(pallas_conv_bn, mm_dtype=matmul_dtype)
    features = None
    for lidar in inputs:
        f = _resnet18_features(lidar, params, conv,
                               pallas_maxpool_3x3_s2, pallas_global_avgpool)
        features = f if features is None else features + f
    return features


def lidar_encoder_reference(inputs, params):
    features = None
    for lidar in inputs:
        f = _resnet18_features(lidar, params, ref_conv_bn,
                               ref_maxpool_3x3_s2, ref_global_avgpool)
        features = f if features is None else features + f
    return features


def make_params(key, in_channels=2):
    """Deterministic, randomly initialized ResNet-18 params (HWIO conv weights,
    BatchNorm eval-mode statistics)."""
    cnt = [0]

    def nk():
        cnt[0] += 1
        return jax.random.fold_in(key, cnt[0])

    def conv_w(kh, kw, cin, cout):
        return (jax.random.normal(nk(), (kh, kw, cin, cout), jnp.float32)
                * math.sqrt(2.0 / (kh * kw * cin)))

    def bn_p(c):
        return dict(
            gamma=jax.random.uniform(nk(), (c,), jnp.float32, 0.5, 1.5),
            beta=0.1 * jax.random.normal(nk(), (c,), jnp.float32),
            mean=0.1 * jax.random.normal(nk(), (c,), jnp.float32),
            var=jax.random.uniform(nk(), (c,), jnp.float32, 0.5, 1.5),
        )

    params = {'conv1': conv_w(7, 7, in_channels, 64), 'bn1': bn_p(64)}
    cfg = (('layer1', 64, 64, 1), ('layer2', 64, 128, 2),
           ('layer3', 128, 256, 2), ('layer4', 256, 512, 2))
    for name, cin, cout, stride in cfg:
        blocks = []
        for b in range(2):
            s = stride if b == 0 else 1
            c_in = cin if b == 0 else cout
            blk = {'conv1': conv_w(3, 3, c_in, cout), 'bn1': bn_p(cout),
                   'conv2': conv_w(3, 3, cout, cout), 'bn2': bn_p(cout)}
            if s != 1 or c_in != cout:
                blk['down_conv'] = conv_w(1, 1, c_in, cout)
                blk['down_bn'] = bn_p(cout)
            blocks.append(blk)
        params[name] = blocks
    return params


if __name__ == "__main__":
    key = jax.random.PRNGKey(0)
    kp, kx1, kx2 = jax.random.split(key, 3)
    params = make_params(kp, in_channels=2)
    # list of LiDAR inputs (NCHW, in_channels=2), as in LidarEncoder.forward
    inputs = [jax.random.normal(kx1, (2, 2, 32, 32), jnp.float32),
              jax.random.normal(kx2, (2, 2, 32, 32), jnp.float32)]

    ref = jax.block_until_ready(lidar_encoder_reference(inputs, params))
    assert ref.shape == (2, 512)

    # f32-at-matmul path (structural check)
    out_f32 = jax.block_until_ready(
        lidar_encoder_forward(inputs, params, matmul_dtype=jnp.float32))
    assert out_f32.shape == (2, 512)
    rel_f32 = float(jnp.linalg.norm(out_f32 - ref) / (jnp.linalg.norm(ref) + 1e-12))
    assert rel_f32 < 5e-2, f"f32 path mismatch vs reference: rel L2 {rel_f32}"

    # bf16-at-matmul fast path (default): f32 accumulation / BN / residuals
    out_bf16 = jax.block_until_ready(lidar_encoder_forward(inputs, params))
    assert out_bf16.shape == (2, 512)
    rel_bf16 = float(jnp.linalg.norm(out_bf16 - ref) / (jnp.linalg.norm(ref) + 1e-12))
    assert rel_bf16 < 1.5e-1, f"bf16 path mismatch vs reference: rel L2 {rel_bf16}"

    print("KERNEL_OK")
</pallas_src>

<mosaic_0001>
module attributes {stable_mosaic.version = 11 : i64} {
  func.func @_probe(%arg0: i32, %arg1: memref<16x128xf32, #tpu.memory_space<vmem>>, %arg2: memref<8x128xf32, #tpu.memory_space<vmem>>) attributes {dimension_semantics = [#tpu.dimension_semantics<arbitrary>], iteration_bounds = array<i64: 2>, scalar_prefetch = 0 : i64, scratch_operands = 0 : i64, tpu.core_type = #tpu.core_type<tc>, window_params = [{pipeline_mode = #tpu.pipeline_mode<synchronous>, transform_indices = @transform_0, window_bounds = array<i64: 16, 128>}, {transform_indices = @transform_1, window_bounds = array<i64: 8, 128>}]} {
    %c0 = arith.constant 0 : index
    %c0_0 = arith.constant 0 : index
    %0 = vector.load %arg1[%c0, %c0_0] : memref<16x128xf32, #tpu.memory_space<vmem>>, vector<8x128xf32>
    %cst = arith.constant 1.000000e+00 : f32
    %1 = vector.broadcast %cst : f32 to vector<8x128xf32>
    %2 = arith.addf %0, %1 : vector<8x128xf32>
    %c0_1 = arith.constant 0 : index
    %c0_2 = arith.constant 0 : index
    %3 = vector.load %arg2[%c0_1, %c0_2] : memref<8x128xf32, #tpu.memory_space<vmem>>, vector<8x128xf32>
    tpu.vector_store %arg2[%c0_1, %c0_2], %2 {strides = array<i32>} : memref<8x128xf32, #tpu.memory_space<vmem>>, vector<8x128xf32>,
    return
  }
  func.func @transform_0(%arg0: i32) -> (i32, i32) {
    %c0_i32 = arith.constant 0 : i32
    %c0_i32_0 = arith.constant 0 : i32
    %c0_i32_1 = arith.constant 0 : i32
    return %c0_i32, %c0_i32_0 : i32, i32
  }
  func.func @transform_1(%arg0: i32) -> (i32, i32) {
    %c0_i32 = arith.constant 0 : i32
    %c0_i32_0 = arith.constant 0 : i32
    return %arg0, %c0_i32 : i32, i32
  }
}

module attributes {stable_mosaic.version = 11 : i64} {
  func.func @kernel(%arg0: i32, %arg1: memref<256x128xf32, #tpu.memory_space<vmem>>, %arg2: memref<128x64xf32, #tpu.memory_space<vmem>>, %arg3: memref<1x64xf32, #tpu.memory_space<vmem>>, %arg4: memref<1x64xf32, #tpu.memory_space<vmem>>, %arg5: memref<256x64xf32, #tpu.memory_space<vmem>>) attributes {dimension_semantics = [#tpu.dimension_semantics<parallel>], iteration_bounds = array<i64: 2>, scalar_prefetch = 0 : i64, scratch_operands = 0 : i64, tpu.core_type = #tpu.core_type<tc>, window_params = [{transform_indices = @transform_0, window_bounds = array<i64: 256, 128>}, {pipeline_mode = #tpu.pipeline_mode<synchronous>, transform_indices = @transform_1, window_bounds = array<i64: 128, 64>}, {pipeline_mode = #tpu.pipeline_mode<synchronous>, transform_indices = @transform_2, window_bounds = array<i64: 1, 64>}, {pipeline_mode = #tpu.pipeline_mode<synchronous>, transform_indices = @transform_3, window_bounds = array<i64: 1, 64>}, {transform_indices = @transform_4, window_bounds = array<i64: 256, 64>}]} {
    %c0 = arith.constant 0 : index
    %c0_0 = arith.constant 0 : index
    %0 = vector.load %arg1[%c0, %c0_0] : memref<256x128xf32, #tpu.memory_space<vmem>>, vector<256x128xf32>
    %c0_1 = arith.constant 0 : index
    %c0_2 = arith.constant 0 : index
    %1 = vector.load %arg2[%c0_1, %c0_2] : memref<128x64xf32, #tpu.memory_space<vmem>>, vector<128x64xf32>
    %cst = arith.constant dense<0.000000e+00> : vector<256x64xf32>
    %2 = tpu.matmul %0, %1, %cst {dimension_numbers = #tpu.dot_dimension_numbers<[1], [0], [0], [1], [0, 0, 1, 1], [], []>} : vector<256x128xf32>, vector<128x64xf32>, vector<256x64xf32> -> vector<256x64xf32>
    %c0_3 = arith.constant 0 : index
    %c0_4 = arith.constant 0 : index
    %3 = vector.load %arg3[%c0_3, %c0_4] : memref<1x64xf32, #tpu.memory_space<vmem>>, vector<1x64xf32>
    %4 = vector.broadcast %3 : vector<1x64xf32> to vector<256x64xf32>
    %5 = arith.mulf %2, %4 : vector<256x64xf32>
    %c0_5 = arith.constant 0 : index
    %c0_6 = arith.constant 0 : index
    %6 = vector.load %arg4[%c0_5, %c0_6] : memref<1x64xf32, #tpu.memory_space<vmem>>, vector<1x64xf32>
    %7 = vector.broadcast %6 : vector<1x64xf32> to vector<256x64xf32>
    %8 = arith.addf %5, %7 : vector<256x64xf32>
    %cst_7 = arith.constant 0.000000e+00 : f32
    %9 = vector.broadcast %cst_7 : f32 to vector<256x64xf32>
    %10 = arith.maximumf %8, %9 : vector<256x64xf32>
    %c0_8 = arith.constant 0 : index
    %c0_9 = arith.constant 0 : index
    %11 = vector.load %arg5[%c0_8, %c0_9] : memref<256x64xf32, #tpu.memory_space<vmem>>, vector<256x64xf32>
    tpu.vector_store %arg5[%c0_8, %c0_9], %10 {strides = array<i32>} : memref<256x64xf32, #tpu.memory_space<vmem>>, vector<256x64xf32>,
    return
  }
  func.func @transform_0(%arg0: i32) -> (i32, i32) {
    %c0_i32 = arith.constant 0 : i32
    %c0_i32_0 = arith.constant 0 : i32
    return %arg0, %c0_i32 : i32, i32
  }
  func.func @transform_1(%arg0: i32) -> (i32, i32) {
    %c0_i32 = arith.constant 0 : i32
    %c0_i32_0 = arith.constant 0 : i32
    %c0_i32_1 = arith.constant 0 : i32
    return %c0_i32, %c0_i32_0 : i32, i32
  }
  func.func @transform_2(%arg0: i32) -> (i32, i32) {
    %c0_i32 = arith.constant 0 : i32
    %c0_i32_0 = arith.constant 0 : i32
    %c0_i32_1 = arith.constant 0 : i32
    return %c0_i32, %c0_i32_0 : i32, i32
  }
  func.func @transform_3(%arg0: i32) -> (i32, i32) {
    %c0_i32 = arith.constant 0 : i32
    %c0_i32_0 = arith.constant 0 : i32
    %c0_i32_1 = arith.constant 0 : i32
    return %c0_i32, %c0_i32_0 : i32, i32
  }
  func.func @transform_4(%arg0: i32) -> (i32, i32) {
    %c0_i32 = arith.constant 0 : i32
    %c0_i32_0 = arith.constant 0 : i32
    return %arg0, %c0_i32 : i32, i32
  }
}

</mosaic_0001>

<llo_original>
// kernel: tpu_custom_call.1
$region0: #{tpu_custom_call.1}
  #allocation0 [shape = 'u32[]', space=smem, size = 0x4, offset = 0x4, fixed_abs, tag = 'smem constant byte address 0x4 - core index']
  #allocation1 [shape = 'u32[144,128]{1,0:T(1,128)}', space=vmem, size = 0x12000, scoped, tag = 'internal scratch']
  %s0 = inlined_call_operand.hbm [shape: f32[16,128], index: 0, kind: input, shape index: {}]
  %s1 = inlined_call_operand.hbm [shape: f32[16,128], index: 1, kind: output, shape index: {}]
  %s2 = sld [smem:[#allocation0]]
  $region41: #{tpu_custom_call.1} parent=0
    _
  %s4 = ssub.s32 1, %s2
  %s5 = scalar_select 0, %s4, %s2
  $region1: #{tpu_custom_call.1} parent=0
    #allocation2 [shape = 'u8[8192]{0}', space=vmem, size = 0x2000, scoped, tag = 'input window, operand 0, single buffered']
    #allocation3 [shape = 's32[2]{0}', space=sflag, size = 0x8, scoped, tag = 'scoped memory for tpu_custom_call.1']
    #allocation4 [shape = 's32[2]{0}', space=sflag, size = 0x8, scoped, tag = 'scoped memory for tpu_custom_call.1']
    #allocation5 [shape = 'u8[8192]{0}', space=vmem, size = 0x2000, scoped, tag = 'output window, operand 0']
    %6 = vsyncpa [#allocation3], 0
    %7 = vsyncpa [#allocation4], 0
    %s8 = scalar_lea.sflag [#allocation4], 1
    %9 = vsyncpa %s8, 0
    loop: start=0, step=1, limit=4
    $region2: #{tpu_custom_call.1} parent=1 // loop_pre_header
      _
    $region3: #{tpu_custom_call.1} parent=1 // loop_header
      %s11 = sphi 0, %s15
      %p12 = scmp.ge.s32.totalorder %s11, 4
      %s19 = sphi 0, %s19
      %s21 = sphi 0, %s19
      %s22 = sphi 0, %s21
      %s36 = sphi 0, %s22
      %s42 = sphi 0, %s44
      %s45 = sphi 0, %s42
      %s46 = sphi 0, %s45
      %s62 = sphi 0, %s46
    $region4: #{tpu_custom_call.1} parent=1 // loop_header_branch
      %14 = sbr.rel (%p12) target = $region8
    $region5: #{tpu_custom_call.1} parent=1 // loop_body
      %s16 = ssub.s32 %s11, 1
      %s17 = ssub.s32 %s11, 2
      %s18 = sadd.s32 %s11, 1
      %s20 = sadd.s32 %s19, 1
      %p23 = scmp.eq.s32.totalorder %s11, 1
      %p24 = scmp.ne.s32.totalorder %s19, %s21
      %p25 = scmp.eq.s32.totalorder %s11, 0
      %p26 = por %p24, %p25
      %p27 = scmp.ne.s32.totalorder %s19, %s21
      %p28 = scmp.eq.s32.totalorder %s16, 1
      %p29 = por %p27, %p28
      %p30 = scmp.ne.s32.totalorder %s21, %s22
      %p31 = scmp.eq.s32.totalorder %s16, 0
      %p32 = por %p30, %p31
      %p33 = scmp.ne.s32.totalorder %s21, %s22
      %p34 = scmp.eq.s32.totalorder %s17, 1
      %p35 = por %p33, %p34
      %p37 = scmp.ne.s32.totalorder %s22, %s36
      %p38 = scmp.eq.s32.totalorder %s17, 0
      %p39 = por %p37, %p38
      %s40 = ssub.s32 %s11, %s18
      %p41 = scmp.eq.s32.totalorder %s40, 0
      %s43 = sadd.s32 %s42, 1
      %s44 = scalar_select %p41, %s42, %s43
      %p47 = pneg %p41
      %p48 = scmp.eq.s32.totalorder %s11, 1
      %p49 = por %p47, %p48
      %p50 = scmp.ne.s32.totalorder %s42, %s45
      %p51 = scmp.eq.s32.totalorder %s11, 0
      %p52 = por %p50, %p51
      %p53 = scmp.ne.s32.totalorder %s42, %s45
      %p54 = scmp.eq.s32.totalorder %s16, 1
      %p55 = por %p53, %p54
      %p56 = scmp.ne.s32.totalorder %s45, %s46
      %p57 = scmp.eq.s32.totalorder %s16, 0
      %p58 = por %p56, %p57
      %p59 = scmp.ne.s32.totalorder %s45, %s46
      %p60 = scmp.eq.s32.totalorder %s17, 1
      %p61 = por %p59, %p60
      %p63 = scmp.ne.s32.totalorder %s46, %s62
      %p64 = scmp.eq.s32.totalorder %s17, 0
      %p65 = por %p63, %p64
      %p66 = scmp.le.s32.totalorder 1, %s11
      %p67 = scmp.lt.s32.totalorder %s11, 3
      %p68 = pnand %p66, %p67
      %p69 = pneg %p68
      // Predicated region
      $region9: #{tpu_custom_call.1} parent=5 // pred_check
        _
      $region10: #{tpu_custom_call.1} parent=5 // pred_check_branch
        %71 = sbr.rel (%p68) target = $region12
      $region11: #{tpu_custom_call.1} parent=5 // pred_region
        %s72 = ssub.s32 %s11, 1
        // Predicated region
        $region13: #{tpu_custom_call.1} parent=11 // pred_check
          %p73 = pneg %p32
        $region14: #{tpu_custom_call.1} parent=11 // pred_check_branch
          %75 = sbr.rel (%p73) target = $region16
        $region15: #{tpu_custom_call.1} parent=11 // pred_region
          %s77 = ssub.s32 256, 256
          %78 = vsyncadd [#allocation3], %s77
          %s79 = sshll.u32 [#allocation2], 4
          %s80 = int_to_ptr.vmem [resolvable:$true] %s79
          %85 = dma.hbm_to_vmem [thread:$0]  %s0, 256, %s80, [#allocation3], 128, 128, 8
        $region16: #{tpu_custom_call.1} parent=11 // pred_fallthru
          _
      $region12: #{tpu_custom_call.1} parent=5 // pred_fallthru
        _
      %p86 = scmp.lt.s32.totalorder %s11, 2
      // Predicated region
      $region17: #{tpu_custom_call.1} parent=5 // pred_check
        %p87 = pneg %p86
      $region18: #{tpu_custom_call.1} parent=5 // pred_check_branch
        %89 = sbr.rel (%p87) target = $region20
      $region19: #{tpu_custom_call.1} parent=5 // pred_region
        _
      $region20: #{tpu_custom_call.1} parent=5 // pred_fallthru
        _
      %p90 = scmp.le.s32.totalorder 1, %s11
      %p91 = scmp.lt.s32.totalorder %s11, 3
      %p92 = pnand %p90, %p91
      %p93 = pneg %p92
      // Predicated region
      $region21: #{tpu_custom_call.1} parent=5 // pred_check
        _
      $region22: #{tpu_custom_call.1} parent=5 // pred_check_branch
        %95 = sbr.rel (%p92) target = $region24
      $region23: #{tpu_custom_call.1} parent=5 // pred_region
        %s96 = ssub.s32 %s11, 1
        // Predicated region
        $region25: #{tpu_custom_call.1} parent=23 // pred_check
          %p97 = pneg %p32
        $region26: #{tpu_custom_call.1} parent=23 // pred_check_branch
          %99 = sbr.rel (%p97) target = $region28
        $region27: #{tpu_custom_call.1} parent=23 // pred_region
          %100 = dma.done [#allocation3], 256
        $region28: #{tpu_custom_call.1} parent=23 // pred_fallthru
          _
        %p101 = pneg %p32
        %p102 = pneg %p29
        %p103 = pneg %p58
        %p104 = pneg %p55
        %s105 = sand.u32 %s45, 1
        %s106 = scalar_lea.sflag [#allocation4], %s105
        %s107 = sand.u32 %s45, 1
        %s108 = smul.addr %s107, 8
        %s109 = scalar_lea.vmem [#allocation5], %s108
        %v110 = vld [vmem:[#allocation2] sm:$0xff]
        %v111 = vadd.f32 %v110, 1.0
        %112 = vst [vmem:[%s109] sm:$0xff] %v111
        %s113 = sand.u32 %s45, 1
        %s114 = scalar_lea.sflag [#allocation4], %s113
        %s115 = sand.u32 %s45, 1
        %s116 = smul.addr %s115, 8
        %s117 = scalar_lea.vmem [#allocation5], %s116
        // Predicated region
        $region29: #{tpu_custom_call.1} parent=23 // pred_check
          %p118 = pneg %p55
        $region30: #{tpu_custom_call.1} parent=23 // pred_check_branch
          %120 = sbr.rel (%p118) target = $region32
        $region31: #{tpu_custom_call.1} parent=23 // pred_region
          %s122 = ssub.s32 128, 128
          %123 = vsyncadd %s114, %s122
          %s124 = smul.addr %s16, 128
          %s125 = scalar_lea.hbm %s1, %s124
          %s127 = sshll.u32 %s117, 4
          %s128 = int_to_ptr.vmem [resolvable:$true] %s127
          %130 = dma.vmem_to_hbm [thread:$0]  %s128, 128, %s125, %s114
        $region32: #{tpu_custom_call.1} parent=23 // pred_fallthru
          _
      $region24: #{tpu_custom_call.1} parent=5 // pred_fallthru
        _
      %p131 = scmp.le.s32.totalorder 2, %s11
      // Predicated region
      $region33: #{tpu_custom_call.1} parent=5 // pred_check
        %p132 = pneg %p131
      $region34: #{tpu_custom_call.1} parent=5 // pred_check_branch
        %134 = sbr.rel (%p132) target = $region36
      $region35: #{tpu_custom_call.1} parent=5 // pred_region
        %s135 = ssub.s32 %s11, 2
        // Predicated region
        $region37: #{tpu_custom_call.1} parent=35 // pred_check
          %p136 = pneg %p61
        $region38: #{tpu_custom_call.1} parent=35 // pred_check_branch
          %138 = sbr.rel (%p136) target = $region40
        $region39: #{tpu_custom_call.1} parent=35 // pred_region
          %s139 = sand.u32 %s46, 1
          %s140 = scalar_lea.sflag [#allocation4], %s139
          %s141 = sand.u32 %s46, 1
          %s142 = smul.addr %s141, 8
          %s143 = scalar_lea.vmem [#allocation5], %s142
          %144 = dma.done %s140, 128
        $region40: #{tpu_custom_call.1} parent=35 // pred_fallthru
          _
      $region36: #{tpu_custom_call.1} parent=5 // pred_fallthru
        _
    $region6: #{tpu_custom_call.1} parent=1 // loop_footer
      %s15 = sadd.s32 1, %s11
    $region7: #{tpu_custom_call.1} parent=1 // loop_footer_branch
      %10 = sbr.rel target = $region3
    $region8: #{tpu_custom_call.1} parent=1 // loop_exit
      _
    %145 = vsyncpa [#allocation3], 1
    %s146 = scalar_lea.sflag [#allocation3], 1
    %147 = vsyncpa %s146, 1
    %148 = vsyncpa [#allocation4], 1
    %s149 = scalar_lea.sflag [#allocation4], 1
    %150 = vsyncpa %s149, 1

// kernel: tpu_custom_call.1
$region0: #{tpu_custom_call.1}
  #allocation0 [shape = 'u32[]', space=smem, size = 0x4, offset = 0x4, fixed_abs, tag = 'smem constant byte address 0x4 - core index']
  #allocation1 [shape = 'u32[144,128]{1,0:T(1,128)}', space=vmem, size = 0x12000, scoped, tag = 'internal scratch']
  %s0 = inlined_call_operand.hbm [shape: f32[512,128], index: 0, kind: input, shape index: {}]
  %s1 = inlined_call_operand.vmem [shape: f32[128,64], index: 1, kind: input, shape index: {}]
  %s2 = inlined_call_operand.vmem [shape: f32[1,64], index: 2, kind: input, shape index: {}]
  %s3 = inlined_call_operand.vmem [shape: f32[1,64], index: 3, kind: input, shape index: {}]
  %s4 = inlined_call_operand.vmem [shape: f32[512,64], index: 4, kind: output, shape index: {}]
  %s5 = sld [smem:[#allocation0]]
  $region53: #{tpu_custom_call.1} parent=0
    _
  %s7 = ssub.s32 1, %s5
  %s8 = scalar_select 0, %s7, %s5
  $region1: #{tpu_custom_call.1} parent=0
    #allocation2 [shape = 'u8[262144]{0}', space=vmem, size = 0x40000, scoped, tag = 'input window, operand 0']
    #allocation3 [shape = 's32[2]{0}', space=sflag, size = 0x8, scoped, tag = 'scoped memory for tpu_custom_call.1']
    %9 = vsyncpa [#allocation3], 0
    %s10 = scalar_lea.sflag [#allocation3], 1
    %11 = vsyncpa %s10, 0
    loop: start=0, step=1, limit=4
    $region2: #{tpu_custom_call.1} parent=1 // loop_pre_header
      _
    $region3: #{tpu_custom_call.1} parent=1 // loop_header
      %s13 = sphi 0, %s17
      %p14 = scmp.ge.s32.totalorder %s13, 4
      %s23 = sphi 0, %s25
      %s26 = sphi 0, %s23
      %s27 = sphi 0, %s26
      %s43 = sphi 0, %s27
      %s47 = sphi 0, %s47
      %s49 = sphi 0, %s47
      %s50 = sphi 0, %s49
      %s64 = sphi 0, %s50
      %s68 = sphi 0, %s68
      %s70 = sphi 0, %s68
      %s71 = sphi 0, %s70
      %s85 = sphi 0, %s71
      %s89 = sphi 0, %s89
      %s91 = sphi 0, %s89
      %s92 = sphi 0, %s91
      %s106 = sphi 0, %s92
      %s112 = sphi 0, %s114
      %s115 = sphi 0, %s112
      %s116 = sphi 0, %s115
      %s132 = sphi 0, %s116
    $region4: #{tpu_custom_call.1} parent=1 // loop_header_branch
      %16 = sbr.rel (%p14) target = $region8
    $region5: #{tpu_custom_call.1} parent=1 // loop_body
      %s18 = ssub.s32 %s13, 1
      %s19 = ssub.s32 %s13, 2
      %s20 = sadd.s32 %s13, 1
      %s21 = ssub.s32 %s13, %s20
      %p22 = scmp.eq.s32.totalorder %s21, 0
      %s24 = sadd.s32 %s23, 1
      %s25 = scalar_select %p22, %s23, %s24
      %p28 = pneg %p22
      %p29 = scmp.eq.s32.totalorder %s13, 1
      %p30 = por %p28, %p29
      %p31 = scmp.ne.s32.totalorder %s23, %s26
      %p32 = scmp.eq.s32.totalorder %s13, 0
      %p33 = por %p31, %p32
      %p34 = scmp.ne.s32.totalorder %s23, %s26
      %p35 = scmp.eq.s32.totalorder %s18, 1
      %p36 = por %p34, %p35
      %p37 = scmp.ne.s32.totalorder %s26, %s27
      %p38 = scmp.eq.s32.totalorder %s18, 0
      %p39 = por %p37, %p38
      %p40 = scmp.ne.s32.totalorder %s26, %s27
      %p41 = scmp.eq.s32.totalorder %s19, 1
      %p42 = por %p40, %p41
      %p44 = scmp.ne.s32.totalorder %s27, %s43
      %p45 = scmp.eq.s32.totalorder %s19, 0
      %p46 = por %p44, %p45
      %s48 = sadd.s32 %s47, 1
      %p51 = scmp.eq.s32.totalorder %s13, 1
      %p52 = scmp.ne.s32.totalorder %s47, %s49
      %p53 = scmp.eq.s32.totalorder %s13, 0
      %p54 = por %p52, %p53
      %p55 = scmp.ne.s32.totalorder %s47, %s49
      %p56 = scmp.eq.s32.totalorder %s18, 1
      %p57 = por %p55, %p56
      %p58 = scmp.ne.s32.totalorder %s49, %s50
      %p59 = scmp.eq.s32.totalorder %s18, 0
      %p60 = por %p58, %p59
      %p61 = scmp.ne.s32.totalorder %s49, %s50
      %p62 = scmp.eq.s32.totalorder %s19, 1
      %p63 = por %p61, %p62
      %p65 = scmp.ne.s32.totalorder %s50, %s64
      %p66 = scmp.eq.s32.totalorder %s19, 0
      %p67 = por %p65, %p66
      %s69 = sadd.s32 %s68, 1
      %p72 = scmp.eq.s32.totalorder %s13, 1
      %p73 = scmp.ne.s32.totalorder %s68, %s70
      %p74 = scmp.eq.s32.totalorder %s13, 0
      %p75 = por %p73, %p74
      %p76 = scmp.ne.s32.totalorder %s68, %s70
      %p77 = scmp.eq.s32.totalorder %s18, 1
      %p78 = por %p76, %p77
      %p79 = scmp.ne.s32.totalorder %s70, %s71
      %p80 = scmp.eq.s32.totalorder %s18, 0
      %p81 = por %p79, %p80
      %p82 = scmp.ne.s32.totalorder %s70, %s71
      %p83 = scmp.eq.s32.totalorder %s19, 1
      %p84 = por %p82, %p83
      %p86 = scmp.ne.s32.totalorder %s71, %s85
      %p87 = scmp.eq.s32.totalorder %s19, 0
      %p88 = por %p86, %p87
      %s90 = sadd.s32 %s89, 1
      %p93 = scmp.eq.s32.totalorder %s13, 1
      %p94 = scmp.ne.s32.totalorder %s89, %s91
      %p95 = scmp.eq.s32.totalorder %s13, 0
      %p96 = por %p94, %p95
      %p97 = scmp.ne.s32.totalorder %s89, %s91
      %p98 = scmp.eq.s32.totalorder %s18, 1
      %p99 = por %p97, %p98
      %p100 = scmp.ne.s32.totalorder %s91, %s92
      %p101 = scmp.eq.s32.totalorder %s18, 0
      %p102 = por %p100, %p101
      %p103 = scmp.ne.s32.totalorder %s91, %s92
      %p104 = scmp.eq.s32.totalorder %s19, 1
      %p105 = por %p103, %p104
      %p107 = scmp.ne.s32.totalorder %s92, %s106
      %p108 = scmp.eq.s32.totalorder %s19, 0
      %p109 = por %p107, %p108
      %s110 = ssub.s32 %s13, %s20
      %p111 = scmp.eq.s32.totalorder %s110, 0
      %s113 = sadd.s32 %s112, 1
      %s114 = scalar_select %p111, %s112, %s113
      %p117 = pneg %p111
      %p118 = scmp.eq.s32.totalorder %s13, 1
      %p119 = por %p117, %p118
      %p120 = scmp.ne.s32.totalorder %s112, %s115
      %p121 = scmp.eq.s32.totalorder %s13, 0
      %p122 = por %p120, %p121
      %p123 = scmp.ne.s32.totalorder %s112, %s115
      %p124 = scmp.eq.s32.totalorder %s18, 1
      %p125 = por %p123, %p124
      %p126 = scmp.ne.s32.totalorder %s115, %s116
      %p127 = scmp.eq.s32.totalorder %s18, 0
      %p128 = por %p126, %p127
      %p129 = scmp.ne.s32.totalorder %s115, %s116
      %p130 = scmp.eq.s32.totalorder %s19, 1
      %p131 = por %p129, %p130
      %p133 = scmp.ne.s32.totalorder %s116, %s132
      %p134 = scmp.eq.s32.totalorder %s19, 0
      %p135 = por %p133, %p134
      %p136 = scmp.le.s32.totalorder 1, %s13
      %p137 = scmp.lt.s32.totalorder %s13, 3
      %p138 = pnand %p136, %p137
      %p139 = pneg %p138
      // Predicated region
      $region9: #{tpu_custom_call.1} parent=5 // pred_check
        _
      $region10: #{tpu_custom_call.1} parent=5 // pred_check_branch
        %141 = sbr.rel (%p138) target = $region12
      $region11: #{tpu_custom_call.1} parent=5 // pred_region
        %s142 = ssub.s32 %s13, 1
        // Predicated region
        $region13: #{tpu_custom_call.1} parent=11 // pred_check
          %p143 = pneg %p60
        $region14: #{tpu_custom_call.1} parent=11 // pred_check_branch
          %145 = sbr.rel (%p143) target = $region16
        $region15: #{tpu_custom_call.1} parent=11 // pred_region
          _
        $region16: #{tpu_custom_call.1} parent=11 // pred_fallthru
          _
        // Predicated region
        $region17: #{tpu_custom_call.1} parent=11 // pred_check
          %p146 = pneg %p81
        $region18: #{tpu_custom_call.1} parent=11 // pred_check_branch
          %148 = sbr.rel (%p146) target = $region20
        $region19: #{tpu_custom_call.1} parent=11 // pred_region
          _
        $region20: #{tpu_custom_call.1} parent=11 // pred_fallthru
          _
        // Predicated region
        $region21: #{tpu_custom_call.1} parent=11 // pred_check
          %p149 = pneg %p102
        $region22: #{tpu_custom_call.1} parent=11 // pred_check_branch
          %151 = sbr.rel (%p149) target = $region24
        $region23: #{tpu_custom_call.1} parent=11 // pred_region
          _
        $region24: #{tpu_custom_call.1} parent=11 // pred_fallthru
          _
      $region12: #{tpu_custom_call.1} parent=5 // pred_fallthru
        _
      %p152 = scmp.lt.s32.totalorder %s13, 2
      // Predicated region
      $region25: #{tpu_custom_call.1} parent=5 // pred_check
        %p153 = pneg %p152
      $region26: #{tpu_custom_call.1} parent=5 // pred_check_branch
        %155 = sbr.rel (%p153) target = $region28
      $region27: #{tpu_custom_call.1} parent=5 // pred_region
        // Predicated region
        $region29: #{tpu_custom_call.1} parent=27 // pred_check
          %p156 = pneg %p33
        $region30: #{tpu_custom_call.1} parent=27 // pred_check_branch
          %158 = sbr.rel (%p156) target = $region32
        $region31: #{tpu_custom_call.1} parent=27 // pred_region
          %s159 = sand.u32 %s23, 1
          %s160 = scalar_lea.sflag [#allocation3], %s159
          %s161 = sand.u32 %s23, 1
          %s162 = smul.addr %s161, 256
          %s163 = scalar_lea.vmem [#allocation2], %s162
          %s164 = smul.u32 32, %s13
          %s166 = ssub.s32 4096, 4096
          %167 = vsyncadd %s160, %s166
          %s168 = smul.addr %s164, 128
          %s169 = scalar_lea.hbm %s0, %s168
          %s170 = sshll.u32 %s163, 4
          %s171 = int_to_ptr.vmem [resolvable:$true] %s170
          %176 = dma.hbm_to_vmem [thread:$0]  %s169, 4096, %s171, %s160, 128, 128, 8
        $region32: #{tpu_custom_call.1} parent=27 // pred_fallthru
          _
      $region28: #{tpu_custom_call.1} parent=5 // pred_fallthru
        _
      %p177 = scmp.le.s32.totalorder 1, %s13
      %p178 = scmp.lt.s32.totalorder %s13, 3
      %p179 = pnand %p177, %p178
      %p180 = pneg %p179
      // Predicated region
      $region33: #{tpu_custom_call.1} parent=5 // pred_check
        _
      $region34: #{tpu_custom_call.1} parent=5 // pred_check_branch
        %182 = sbr.rel (%p179) target = $region36
      $region35: #{tpu_custom_call.1} parent=5 // pred_region
        %s183 = ssub.s32 %s13, 1
        %s184 = sand.u32 %s26, 1
        %s185 = scalar_lea.sflag [#allocation3], %s184
        %s186 = sand.u32 %s26, 1
        %s187 = smul.addr %s186, 256
        %s188 = scalar_lea.vmem [#allocation2], %s187
        // Predicated region
        $region37: #{tpu_custom_call.1} parent=35 // pred_check
          %p189 = pneg %p39
        $region38: #{tpu_custom_call.1} parent=35 // pred_check_branch
          %191 = sbr.rel (%p189) target = $region40
        $region39: #{tpu_custom_call.1} parent=35 // pred_region
          %192 = dma.done %s185, 4096
        $region40: #{tpu_custom_call.1} parent=35 // pred_fallthru
          _
        %s193 = sand.u32 %s26, 1
        %s194 = scalar_lea.sflag [#allocation3], %s193
        %s195 = sand.u32 %s26, 1
        %s196 = smul.addr %s195, 256
        %s197 = scalar_lea.vmem [#allocation2], %s196
        %p198 = pneg %p39
        %p199 = pneg %p36
        %p200 = pneg %p60
        %p201 = pneg %p57
        %p202 = pneg %p81
        %p203 = pneg %p78
        %p204 = pneg %p102
        %p205 = pneg %p99
        %p206 = pneg %p128
        %p207 = pneg %p125
        %s208 = smul.u32 32, %s18
        %p209 = scmp.lt.s32.totalorder %s208, 63
        %s210 = scalar_select %p209, %s208, 63
        %s211 = smul.addr %s210, 8
        %s212 = scalar_lea.vmem %s4, %s211
        %s213 = smul.u32 32, %s18
        %s214 = smul.u32 32, %s18
        %p215 = scmp.lt.s32.totalorder %s214, 63
        %s216 = scalar_select %p215, %s214, 63
        %s217 = smul.addr %s216, 8
        %s218 = scalar_lea.vmem %s4, %s217
        %s219 = smul.u32 32, %s18
        %v220 = vld [vmem:[%s188] sm:$0xff]
        %v221 = vld [vmem:[%s188 + $0x8] sm:$0xff]
        %v222 = vld [vmem:[%s188 + $0x10] sm:$0xff]
        %v223 = vld [vmem:[%s188 + $0x18] sm:$0xff]
        %v224 = vld [vmem:[%s188 + $0x20] sm:$0xff]
        %v225 = vld [vmem:[%s188 + $0x28] sm:$0xff]
        %v226 = vld [vmem:[%s188 + $0x30] sm:$0xff]
        %v227 = vld [vmem:[%s188 + $0x38] sm:$0xff]
        %v228 = vld [vmem:[%s188 + $0x40] sm:$0xff]
        %v229 = vld [vmem:[%s188 + $0x48] sm:$0xff]
        %v230 = vld [vmem:[%s188 + $0x50] sm:$0xff]
        %v231 = vld [vmem:[%s188 + $0x58] sm:$0xff]
        %v232 = vld [vmem:[%s188 + $0x60] sm:$0xff]
        %v233 = vld [vmem:[%s188 + $0x68] sm:$0xff]
        %v234 = vld [vmem:[%s188 + $0x70] sm:$0xff]
        %v235 = vld [vmem:[%s188 + $0x78] sm:$0xff]
        %v236 = vld [vmem:[%s188 + $0x80] sm:$0xff]
        %v237 = vld [vmem:[%s188 + $0x88] sm:$0xff]
        %v238 = vld [vmem:[%s188 + $0x90] sm:$0xff]
        %v239 = vld [vmem:[%s188 + $0x98] sm:$0xff]
        %v240 = vld [vmem:[%s188 + $0xa0] sm:$0xff]
        %v241 = vld [vmem:[%s188 + $0xa8] sm:$0xff]
        %v242 = vld [vmem:[%s188 + $0xb0] sm:$0xff]
        %v243 = vld [vmem:[%s188 + $0xb8] sm:$0xff]
        %v244 = vld [vmem:[%s188 + $0xc0] sm:$0xff]
        %v245 = vld [vmem:[%s188 + $0xc8] sm:$0xff]
        %v246 = vld [vmem:[%s188 + $0xd0] sm:$0xff]
        %v247 = vld [vmem:[%s188 + $0xd8] sm:$0xff]
        %v248 = vld [vmem:[%s188 + $0xe0] sm:$0xff]
        %v249 = vld [vmem:[%s188 + $0xe8] sm:$0xff]
        %v250 = vld [vmem:[%s188 + $0xf0] sm:$0xff]
        %v251 = vld [vmem:[%s188 + $0xf8] sm:$0xff]
        %v252 = vld [vmem:[%s1] sm:$0xff]
        %v253 = vld [vmem:[%s1 + $0x8] sm:$0xff]
        %v254 = vld [vmem:[%s1 + $0x10] sm:$0xff]
        %v255 = vld [vmem:[%s1 + $0x18] sm:$0xff]
        %v256 = vld [vmem:[%s1 + $0x20] sm:$0xff]
        %v257 = vld [vmem:[%s1 + $0x28] sm:$0xff]
        %v258 = vld [vmem:[%s1 + $0x30] sm:$0xff]
        %v259 = vld [vmem:[%s1 + $0x38] sm:$0xff]
        %v260 = vld [vmem:[%s1 + $0x40] sm:$0xff]
        %v261 = vld [vmem:[%s1 + $0x48] sm:$0xff]
        %v262 = vld [vmem:[%s1 + $0x50] sm:$0xff]
        %v263 = vld [vmem:[%s1 + $0x58] sm:$0xff]
        %v264 = vld [vmem:[%s1 + $0x60] sm:$0xff]
        %v265 = vld [vmem:[%s1 + $0x68] sm:$0xff]
        %v266 = vld [vmem:[%s1 + $0x70] sm:$0xff]
        %v267 = vld [vmem:[%s1 + $0x78] sm:$0xff]
        %268 = vmatprep.subr.mxu0 0.0
        %269 = vmatpush1.msra.mxu0 %v267
        %270 = vmatprep.subr.mxu0 0.0
        %271 = vmatpush1.msra.mxu0 %v266
        %272 = vmatprep.subr.mxu0 0.0
        %273 = vmatpush1.msra.mxu0 %v265
        %274 = vmatprep.subr.mxu0 0.0
        %275 = vmatpush1.msra.mxu0 %v264
        %276 = vmatprep.subr.mxu0 0.0
        %277 = vmatpush1.msra.mxu0 %v263
        %278 = vmatprep.subr.mxu0 0.0
        %279 = vmatpush1.msra.mxu0 %v262
        %280 = vmatprep.subr.mxu0 0.0
        %281 = vmatpush1.msra.mxu0 %v261
        %282 = vmatprep.subr.mxu0 0.0
        %283 = vmatpush1.msra.mxu0 %v260
        %284 = vmatprep.subr.mxu0 0.0
        %285 = vmatpush1.msra.mxu0 %v259
        %286 = vmatprep.subr.mxu0 0.0
        %287 = vmatpush1.msra.mxu0 %v258
        %288 = vmatprep.subr.mxu0 0.0
        %289 = vmatpush1.msra.mxu0 %v257
        %290 = vmatprep.subr.mxu0 0.0
        %291 = vmatpush1.msra.mxu0 %v256
        %292 = vmatprep.subr.mxu0 0.0
        %293 = vmatpush1.msra.mxu0 %v255
        %294 = vmatprep.subr.mxu0 0.0
        %295 = vmatpush1.msra.mxu0 %v254
        %296 = vmatprep.subr.mxu0 0.0
        %297 = vmatpush1.msra.mxu0 %v253
        %298 = vmatprep.subr.mxu0 0.0
        %299 = vmatpush1.msra.mxu0 %v252
        %300 = vmatprep.subr.mxu0 0.0
        %301 = vmatpush2.msra.mxu0 0.0
        %302 = vmatprep.subr.mxu0 0.0
        %303 = vmatpush2.msra.mxu0 0.0
        %304 = vmatprep.subr.mxu0 0.0
        %305 = vmatpush2.msra.mxu0 0.0
        %306 = vmatprep.subr.mxu0 0.0
        %307 = vmatpush2.msra.mxu0 0.0
        %308 = vmatprep.subr.mxu0 0.0
        %309 = vmatpush2.msra.mxu0 0.0
        %310 = vmatprep.subr.mxu0 0.0
        %311 = vmatpush2.msra.mxu0 0.0
        %312 = vmatprep.subr.mxu0 0.0
        %313 = vmatpush2.msra.mxu0 0.0
        %314 = vmatprep.subr.mxu0 0.0
        %315 = vmatpush2.msra.mxu0 0.0
        %316 = vmatprep.subr.mxu0 0.0
        %317 = vmatpush2.msra.mxu0 0.0
        %318 = vmatprep.subr.mxu0 0.0
        %319 = vmatpush2.msra.mxu0 0.0
        %320 = vmatprep.subr.mxu0 0.0
        %321 = vmatpush2.msra.mxu0 0.0
        %322 = vmatprep.subr.mxu0 0.0
        %323 = vmatpush2.msra.mxu0 0.0
        %324 = vmatprep.subr.mxu0 0.0
        %325 = vmatpush2.msra.mxu0 0.0
        %326 = vmatprep.subr.mxu0 0.0
        %327 = vmatpush2.msra.mxu0 0.0
        %328 = vmatprep.subr.mxu0 0.0
        %329 = vmatpush2.msra.mxu0 0.0
        %330 = vmatprep.subr.mxu0 0.0
        %331 = vmatpush2.msra.mxu0 0.0
        %332 = vmatprep.mubr.f32.mxu0 0.0
        %333 = vmatmul.mubr.f32.gmra.mxu0 %v220
        %v334 = vpop.f32.mrf.mxu0
        %v335 = vadd.f32 0.0, %v334
        %v336 = vpop.f32.mrf.mxu0
        %337 = vmatprep.mubr.f32.mxu0 0.0
        %338 = vmatmul.mubr.f32.gmra.mxu0 %v221
        %v339 = vpop.f32.mrf.mxu0
        %v340 = vadd.f32 0.0, %v339
        %v341 = vpop.f32.mrf.mxu0
        %342 = vmatprep.mubr.f32.mxu0 0.0
        %343 = vmatmul.mubr.f32.gmra.mxu0 %v222
        %v344 = vpop.f32.mrf.mxu0
        %v345 = vadd.f32 0.0, %v344
        %v346 = vpop.f32.mrf.mxu0
        %347 = vmatprep.mubr.f32.mxu0 0.0
        %348 = vmatmul.mubr.f32.gmra.mxu0 %v223
        %v349 = vpop.f32.mrf.mxu0
        %v350 = vadd.f32 0.0, %v349
        %v351 = vpop.f32.mrf.mxu0
        %352 = vmatprep.mubr.f32.mxu0 0.0
        %353 = vmatmul.mubr.f32.gmra.mxu0 %v224
        %v354 = vpop.f32.mrf.mxu0
        %v355 = vadd.f32 0.0, %v354
        %v356 = vpop.f32.mrf.mxu0
        %357 = vmatprep.mubr.f32.mxu0 0.0
        %358 = vmatmul.mubr.f32.gmra.mxu0 %v225
        %v359 = vpop.f32.mrf.mxu0
        %v360 = vadd.f32 0.0, %v359
        %v361 = vpop.f32.mrf.mxu0
        %362 = vmatprep.mubr.f32.mxu0 0.0
        %363 = vmatmul.mubr.f32.gmra.mxu0 %v226
        %v364 = vpop.f32.mrf.mxu0
        %v365 = vadd.f32 0.0, %v364
        %v366 = vpop.f32.mrf.mxu0
        %367 = vmatprep.mubr.f32.mxu0 0.0
        %368 = vmatmul.mubr.f32.gmra.mxu0 %v227
        %v369 = vpop.f32.mrf.mxu0
        %v370 = vadd.f32 0.0, %v369
        %v371 = vpop.f32.mrf.mxu0
        %372 = vmatprep.mubr.f32.mxu0 0.0
        %373 = vmatmul.mubr.f32.gmra.mxu0 %v228
        %v374 = vpop.f32.mrf.mxu0
        %v375 = vadd.f32 0.0, %v374
        %v376 = vpop.f32.mrf.mxu0
        %377 = vmatprep.mubr.f32.mxu0 0.0
        %378 = vmatmul.mubr.f32.gmra.mxu0 %v229
        %v379 = vpop.f32.mrf.mxu0
        %v380 = vadd.f32 0.0, %v379
        %v381 = vpop.f32.mrf.mxu0
        %382 = vmatprep.mubr.f32.mxu0 0.0
        %383 = vmatmul.mubr.f32.gmra.mxu0 %v230
        %v384 = vpop.f32.mrf.mxu0
        %v385 = vadd.f32 0.0, %v384
        %v386 = vpop.f32.mrf.mxu0
        %387 = vmatprep.mubr.f32.mxu0 0.0
        %388 = vmatmul.mubr.f32.gmra.mxu0 %v231
        %v389 = vpop.f32.mrf.mxu0
        %v390 = vadd.f32 0.0, %v389
        %v391 = vpop.f32.mrf.mxu0
        %392 = vmatprep.mubr.f32.mxu0 0.0
        %393 = vmatmul.mubr.f32.gmra.mxu0 %v232
        %v394 = vpop.f32.mrf.mxu0
        %v395 = vadd.f32 0.0, %v394
        %v396 = vpop.f32.mrf.mxu0
        %397 = vmatprep.mubr.f32.mxu0 0.0
        %398 = vmatmul.mubr.f32.gmra.mxu0 %v233
        %v399 = vpop.f32.mrf.mxu0
        %v400 = vadd.f32 0.0, %v399
        %v401 = vpop.f32.mrf.mxu0
        %402 = vmatprep.mubr.f32.mxu0 0.0
        %403 = vmatmul.mubr.f32.gmra.mxu0 %v234
        %v404 = vpop.f32.mrf.mxu0
        %v405 = vadd.f32 0.0, %v404
        %v406 = vpop.f32.mrf.mxu0
        %407 = vmatprep.mubr.f32.mxu0 0.0
        %408 = vmatmul.mubr.f32.gmra.mxu0 %v235
        %v409 = vpop.f32.mrf.mxu0
        %v410 = vadd.f32 0.0, %v409
        %v411 = vpop.f32.mrf.mxu0
        %412 = vmatprep.mubr.f32.mxu0 0.0
        %413 = vmatmul.mubr.f32.gmra.mxu0 %v236
        %v414 = vpop.f32.mrf.mxu0
        %v415 = vadd.f32 0.0, %v414
        %v416 = vpop.f32.mrf.mxu0
        %417 = vmatprep.mubr.f32.mxu0 0.0
        %418 = vmatmul.mubr.f32.gmra.mxu0 %v237
        %v419 = vpop.f32.mrf.mxu0
        %v420 = vadd.f32 0.0, %v419
        %v421 = vpop.f32.mrf.mxu0
        %422 = vmatprep.mubr.f32.mxu0 0.0
        %423 = vmatmul.mubr.f32.gmra.mxu0 %v238
        %v424 = vpop.f32.mrf.mxu0
        %v425 = vadd.f32 0.0, %v424
        %v426 = vpop.f32.mrf.mxu0
        %427 = vmatprep.mubr.f32.mxu0 0.0
        %428 = vmatmul.mubr.f32.gmra.mxu0 %v239
        %v429 = vpop.f32.mrf.mxu0
        %v430 = vadd.f32 0.0, %v429
        %v431 = vpop.f32.mrf.mxu0
        %432 = vmatprep.mubr.f32.mxu0 0.0
        %433 = vmatmul.mubr.f32.gmra.mxu0 %v240
        %v434 = vpop.f32.mrf.mxu0
        %v435 = vadd.f32 0.0, %v434
        %v436 = vpop.f32.mrf.mxu0
        %437 = vmatprep.mubr.f32.mxu0 0.0
        %438 = vmatmul.mubr.f32.gmra.mxu0 %v241
        %v439 = vpop.f32.mrf.mxu0
        %v440 = vadd.f32 0.0, %v439
        %v441 = vpop.f32.mrf.mxu0
        %442 = vmatprep.mubr.f32.mxu0 0.0
        %443 = vmatmul.mubr.f32.gmra.mxu0 %v242
        %v444 = vpop.f32.mrf.mxu0
        %v445 = vadd.f32 0.0, %v444
        %v446 = vpop.f32.mrf.mxu0
        %447 = vmatprep.mubr.f32.mxu0 0.0
        %448 = vmatmul.mubr.f32.gmra.mxu0 %v243
        %v449 = vpop.f32.mrf.mxu0
        %v450 = vadd.f32 0.0, %v449
        %v451 = vpop.f32.mrf.mxu0
        %452 = vmatprep.mubr.f32.mxu0 0.0
        %453 = vmatmul.mubr.f32.gmra.mxu0 %v244
        %v454 = vpop.f32.mrf.mxu0
        %v455 = vadd.f32 0.0, %v454
        %v456 = vpop.f32.mrf.mxu0
        %457 = vmatprep.mubr.f32.mxu0 0.0
        %458 = vmatmul.mubr.f32.gmra.mxu0 %v245
        %v459 = vpop.f32.mrf.mxu0
        %v460 = vadd.f32 0.0, %v459
        %v461 = vpop.f32.mrf.mxu0
        %462 = vmatprep.mubr.f32.mxu0 0.0
        %463 = vmatmul.mubr.f32.gmra.mxu0 %v246
        %v464 = vpop.f32.mrf.mxu0
        %v465 = vadd.f32 0.0, %v464
        %v466 = vpop.f32.mrf.mxu0
        %467 = vmatprep.mubr.f32.mxu0 0.0
        %468 = vmatmul.mubr.f32.gmra.mxu0 %v247
        %v469 = vpop.f32.mrf.mxu0
        %v470 = vadd.f32 0.0, %v469
        %v471 = vpop.f32.mrf.mxu0
        %472 = vmatprep.mubr.f32.mxu0 0.0
        %473 = vmatmul.mubr.f32.gmra.mxu0 %v248
        %v474 = vpop.f32.mrf.mxu0
        %v475 = vadd.f32 0.0, %v474
        %v476 = vpop.f32.mrf.mxu0
        %477 = vmatprep.mubr.f32.mxu0 0.0
        %478 = vmatmul.mubr.f32.gmra.mxu0 %v249
        %v479 = vpop.f32.mrf.mxu0
        %v480 = vadd.f32 0.0, %v479
        %v481 = vpop.f32.mrf.mxu0
        %482 = vmatprep.mubr.f32.mxu0 0.0
        %483 = vmatmul.mubr.f32.gmra.mxu0 %v250
        %v484 = vpop.f32.mrf.mxu0
        %v485 = vadd.f32 0.0, %v484
        %v486 = vpop.f32.mrf.mxu0
        %487 = vmatprep.mubr.f32.mxu0 0.0
        %488 = vmatmul.mubr.f32.gmra.mxu0 %v251
        %v489 = vpop.f32.mrf.mxu0
        %v490 = vadd.f32 0.0, %v489
        %v491 = vpop.f32.mrf.mxu0
        %492 = vdwg.mxu0
        %v493 = vld [vmem:[%s2] sm:$0x1]
        %v495 = vlaneseq
        %v496 = vshrl.u32 %v495, 7
        %v497 = vsub.s32 0, %v496
        %v498 = vrot.slane %v493, %v497
        %v500 = vmul.f32 %v335, %v498
        %v501 = vmul.f32 %v340, %v498
        %v502 = vmul.f32 %v345, %v498
        %v503 = vmul.f32 %v350, %v498
        %v504 = vmul.f32 %v355, %v498
        %v505 = vmul.f32 %v360, %v498
        %v506 = vmul.f32 %v365, %v498
        %v507 = vmul.f32 %v370, %v498
        %v508 = vmul.f32 %v375, %v498
        %v509 = vmul.f32 %v380, %v498
        %v510 = vmul.f32 %v385, %v498
        %v511 = vmul.f32 %v390, %v498
        %v512 = vmul.f32 %v395, %v498
        %v513 = vmul.f32 %v400, %v498
        %v514 = vmul.f32 %v405, %v498
        %v515 = vmul.f32 %v410, %v498
        %v516 = vmul.f32 %v415, %v498
        %v517 = vmul.f32 %v420, %v498
        %v518 = vmul.f32 %v425, %v498
        %v519 = vmul.f32 %v430, %v498
        %v520 = vmul.f32 %v435, %v498
        %v521 = vmul.f32 %v440, %v498
        %v522 = vmul.f32 %v445, %v498
        %v523 = vmul.f32 %v450, %v498
        %v524 = vmul.f32 %v455, %v498
        %v525 = vmul.f32 %v460, %v498
        %v526 = vmul.f32 %v465, %v498
        %v527 = vmul.f32 %v470, %v498
        %v528 = vmul.f32 %v475, %v498
        %v529 = vmul.f32 %v480, %v498
        %v530 = vmul.f32 %v485, %v498
        %v531 = vmul.f32 %v490, %v498
        %v532 = vld [vmem:[%s3] sm:$0x1]
        %v534 = vlaneseq
        %v535 = vshrl.u32 %v534, 7
        %v536 = vsub.s32 0, %v535
        %v537 = vrot.slane %v532, %v536
        %v539 = vadd.f32 %v500, %v537
        %v540 = vadd.f32 %v501, %v537
        %v541 = vadd.f32 %v502, %v537
        %v542 = vadd.f32 %v503, %v537
        %v543 = vadd.f32 %v504, %v537
        %v544 = vadd.f32 %v505, %v537
        %v545 = vadd.f32 %v506, %v537
        %v546 = vadd.f32 %v507, %v537
        %v547 = vadd.f32 %v508, %v537
        %v548 = vadd.f32 %v509, %v537
        %v549 = vadd.f32 %v510, %v537
        %v550 = vadd.f32 %v511, %v537
        %v551 = vadd.f32 %v512, %v537
        %v552 = vadd.f32 %v513, %v537
        %v553 = vadd.f32 %v514, %v537
        %v554 = vadd.f32 %v515, %v537
        %v555 = vadd.f32 %v516, %v537
        %v556 = vadd.f32 %v517, %v537
        %v557 = vadd.f32 %v518, %v537
        %v558 = vadd.f32 %v519, %v537
        %v559 = vadd.f32 %v520, %v537
        %v560 = vadd.f32 %v521, %v537
        %v561 = vadd.f32 %v522, %v537
        %v562 = vadd.f32 %v523, %v537
        %v563 = vadd.f32 %v524, %v537
        %v564 = vadd.f32 %v525, %v537
        %v565 = vadd.f32 %v526, %v537
        %v566 = vadd.f32 %v527, %v537
        %v567 = vadd.f32 %v528, %v537
        %v568 = vadd.f32 %v529, %v537
        %v569 = vadd.f32 %v530, %v537
        %v570 = vadd.f32 %v531, %v537
        %v571 = vmax.f32 %v539, 0.0
        %v572 = vmax.f32 %v540, 0.0
        %v573 = vmax.f32 %v541, 0.0
        %v574 = vmax.f32 %v542, 0.0
        %v575 = vmax.f32 %v543, 0.0
        %v576 = vmax.f32 %v544, 0.0
        %v577 = vmax.f32 %v545, 0.0
        %v578 = vmax.f32 %v546, 0.0
        %v579 = vmax.f32 %v547, 0.0
        %v580 = vmax.f32 %v548, 0.0
        %v581 = vmax.f32 %v549, 0.0
        %v582 = vmax.f32 %v550, 0.0
        %v583 = vmax.f32 %v551, 0.0
        %v584 = vmax.f32 %v552, 0.0
        %v585 = vmax.f32 %v553, 0.0
        %v586 = vmax.f32 %v554, 0.0
        %v587 = vmax.f32 %v555, 0.0
        %v588 = vmax.f32 %v556, 0.0
        %v589 = vmax.f32 %v557, 0.0
        %v590 = vmax.f32 %v558, 0.0
        %v591 = vmax.f32 %v559, 0.0
        %v592 = vmax.f32 %v560, 0.0
        %v593 = vmax.f32 %v561, 0.0
        %v594 = vmax.f32 %v562, 0.0
        %v595 = vmax.f32 %v563, 0.0
        %v596 = vmax.f32 %v564, 0.0
        %v597 = vmax.f32 %v565, 0.0
        %v598 = vmax.f32 %v566, 0.0
        %v599 = vmax.f32 %v567, 0.0
        %v600 = vmax.f32 %v568, 0.0
        %v601 = vmax.f32 %v569, 0.0
        %v602 = vmax.f32 %v570, 0.0
        %vm603 = vcmask 523264
        %604 = vst.msk [vmem:[%s218] sm:$0xff] %vm603, %v571
        %605 = vst.msk [vmem:[%s218 + $0x8] sm:$0xff] %vm603, %v572
        %606 = vst.msk [vmem:[%s218 + $0x10] sm:$0xff] %vm603, %v573
        %607 = vst.msk [vmem:[%s218 + $0x18] sm:$0xff] %vm603, %v574
        %608 = vst.msk [vmem:[%s218 + $0x20] sm:$0xff] %vm603, %v575
        %609 = vst.msk [vmem:[%s218 + $0x28] sm:$0xff] %vm603, %v576
        %610 = vst.msk [vmem:[%s218 + $0x30] sm:$0xff] %vm603, %v577
        %611 = vst.msk [vmem:[%s218 + $0x38] sm:$0xff] %vm603, %v578
        %612 = vst.msk [vmem:[%s218 + $0x40] sm:$0xff] %vm603, %v579
        %613 = vst.msk [vmem:[%s218 + $0x48] sm:$0xff] %vm603, %v580
        %614 = vst.msk [vmem:[%s218 + $0x50] sm:$0xff] %vm603, %v581
        %615 = vst.msk [vmem:[%s218 + $0x58] sm:$0xff] %vm603, %v582
        %616 = vst.msk [vmem:[%s218 + $0x60] sm:$0xff] %vm603, %v583
        %617 = vst.msk [vmem:[%s218 + $0x68] sm:$0xff] %vm603, %v584
        %618 = vst.msk [vmem:[%s218 + $0x70] sm:$0xff] %vm603, %v585
        %619 = vst.msk [vmem:[%s218 + $0x78] sm:$0xff] %vm603, %v586
        %620 = vst.msk [vmem:[%s218 + $0x80] sm:$0xff] %vm603, %v587
        %621 = vst.msk [vmem:[%s218 + $0x88] sm:$0xff] %vm603, %v588
        %622 = vst.msk [vmem:[%s218 + $0x90] sm:$0xff] %vm603, %v589
        %623 = vst.msk [vmem:[%s218 + $0x98] sm:$0xff] %vm603, %v590
        %624 = vst.msk [vmem:[%s218 + $0xa0] sm:$0xff] %vm603, %v591
        %625 = vst.msk [vmem:[%s218 + $0xa8] sm:$0xff] %vm603, %v592
        %626 = vst.msk [vmem:[%s218 + $0xb0] sm:$0xff] %vm603, %v593
        %627 = vst.msk [vmem:[%s218 + $0xb8] sm:$0xff] %vm603, %v594
        %628 = vst.msk [vmem:[%s218 + $0xc0] sm:$0xff] %vm603, %v595
        %629 = vst.msk [vmem:[%s218 + $0xc8] sm:$0xff] %vm603, %v596
        %630 = vst.msk [vmem:[%s218 + $0xd0] sm:$0xff] %vm603, %v597
        %631 = vst.msk [vmem:[%s218 + $0xd8] sm:$0xff] %vm603, %v598
        %632 = vst.msk [vmem:[%s218 + $0xe0] sm:$0xff] %vm603, %v599
        %633 = vst.msk [vmem:[%s218 + $0xe8] sm:$0xff] %vm603, %v600
        %634 = vst.msk [vmem:[%s218 + $0xf0] sm:$0xff] %vm603, %v601
        %635 = vst.msk [vmem:[%s218 + $0xf8] sm:$0xff] %vm603, %v602
        %s636 = smul.u32 32, %s18
        %p637 = scmp.lt.s32.totalorder %s636, 63
        %s638 = scalar_select %p637, %s636, 63
        %s639 = smul.addr %s638, 8
        %s640 = scalar_lea.vmem %s4, %s639
        // Predicated region
        $region41: #{tpu_custom_call.1} parent=35 // pred_check
          %p641 = pneg %p125
        $region42: #{tpu_custom_call.1} parent=35 // pred_check_branch
          %643 = sbr.rel (%p641) target = $region44
        $region43: #{tpu_custom_call.1} parent=35 // pred_region
          %s644 = smul.u32 32, %s18
        $region44: #{tpu_custom_call.1} parent=35 // pred_fallthru
          _
      $region36: #{tpu_custom_call.1} parent=5 // pred_fallthru
        _
      %p645 = scmp.le.s32.totalorder 2, %s13
      // Predicated region
      $region45: #{tpu_custom_call.1} parent=5 // pred_check
        %p646 = pneg %p645
      $region46: #{tpu_custom_call.1} parent=5 // pred_check_branch
        %648 = sbr.rel (%p646) target = $region48
      $region47: #{tpu_custom_call.1} parent=5 // pred_region
        %s649 = ssub.s32 %s13, 2
        // Predicated region
        $region49: #{tpu_custom_call.1} parent=47 // pred_check
          %p650 = pneg %p131
        $region50: #{tpu_custom_call.1} parent=47 // pred_check_branch
          %652 = sbr.rel (%p650) target = $region52
        $region51: #{tpu_custom_call.1} parent=47 // pred_region
          %s653 = smul.u32 32, %s19
          %p654 = scmp.lt.s32.totalorder %s653, 63
          %s655 = scalar_select %p654, %s653, 63
          %s656 = smul.addr %s655, 8
          %s657 = scalar_lea.vmem %s4, %s656
        $region52: #{tpu_custom_call.1} parent=47 // pred_fallthru
          _
      $region48: #{tpu_custom_call.1} parent=5 // pred_fallthru
        _
    $region6: #{tpu_custom_call.1} parent=1 // loop_footer
      %s17 = sadd.s32 1, %s13
    $region7: #{tpu_custom_call.1} parent=1 // loop_footer_branch
      %12 = sbr.rel target = $region3
    $region8: #{tpu_custom_call.1} parent=1 // loop_exit
      _
    %658 = vsyncpa [#allocation3], 1
    %s659 = scalar_lea.sflag [#allocation3], 1
    %660 = vsyncpa %s659, 1

</llo_original>
